<compile_context>
chip_gen: v7x
topology: tpu7x:2x2x1
jax: 0.10.0
libtpu: 0.0.40
codegen_flags: <defaults>
</compile_context>

<pallas_src>
import jax
import jax.numpy as jnp
from jax.experimental import pallas as pl
from jax.experimental.pallas import tpu as pltpu


def _patch_embed_kernel(p_ref, w_ref, nrm_ref, o_ref):
    """Fused  y = patches @ W + bias ;  out = LayerNorm(y) * gamma + beta."""
    y = jnp.dot(p_ref[...], w_ref[...], preferred_element_type=jnp.float32)
    nrm = nrm_ref[...]                      # (3, D) f32: conv bias, LN gamma, LN beta
    y = y + nrm[0:1, :]
    inv_d = 1.0 / y.shape[-1]
    mean = jnp.sum(y, axis=-1, keepdims=True) * inv_d
    yc = y - mean                           # two-pass (centered) variance
    var = jnp.sum(yc * yc, axis=-1, keepdims=True) * inv_d
    y = yc * jax.lax.rsqrt(var + 1e-5)      # eps matches nn.LayerNorm default
    o_ref[...] = (y * nrm[1:2, :] + nrm[2:3, :]).astype(o_ref.dtype)


def _im2col_nhwc(x, k, stride, pad):
    """Overlapping patches flattened (kh, kw, C)-major -> [B*Ho*Wo, k*k*C].

    Built from an NHWC view so the expanded tensor is materialized once in
    its final layout (no transpose of the big intermediate).
    """
    B, C, H, W = x.shape
    xh = jnp.transpose(x, (0, 2, 3, 1))                        # NHWC, input-sized
    xp = jnp.pad(xh, ((0, 0), (pad, pad), (pad, pad), (0, 0)))
    Ho = (H + 2 * pad - k) // stride + 1
    Wo = (W + 2 * pad - k) // stride + 1
    cols = []
    for i in range(k):
        for j in range(k):
            cols.append(xp[:, i:i + stride * Ho:stride, j:j + stride * Wo:stride, :])
    patches = jnp.stack(cols, axis=3)                          # [B, Ho, Wo, k*k, C]
    return patches.reshape(B * Ho * Wo, k * k * C), Ho, Wo


def _round_up(n, m):
    return ((n + m - 1) // m) * m


def _pick_tile_m(m, tile_m):
    """Largest multiple-of-16 divisor of m (<= tile_m); prefer >= 4 grid steps
    so a dual-TensorCore part (v7x) gets >= 2 pipelined steps per core."""
    cap = min(tile_m, m)
    divs = [t for t in range(16, cap + 1, 16) if m % t == 0]
    if not divs:
        return None
    for min_steps in (4, 2, 1):
        ok = [t for t in divs if m // t >= min_steps]
        if ok:
            return max(ok)
    return max(divs)


def patch_embedding(x, weight, bias, gamma, beta, *, patch_size, stride,
                    tile_m=4096, out_dtype=None):
    """SegFormer overlapping patch embed.  x: [B, C, H, W] (NCHW, PyTorch-style).

    Returns (tokens [B, Ho*Wo, D], Ho, Wo).  Streamed operands are cast to
    bfloat16 (f32 accumulation in-kernel) -- an intentional precision trade.
    """
    B, C, H, W = x.shape
    D = weight.shape[0]
    k = patch_size
    pad = patch_size // 2
    out_dtype = x.dtype if out_dtype is None else out_dtype

    patches, Ho, Wo = _im2col_nhwc(x.astype(jnp.bfloat16), k, stride, pad)
    M, K = patches.shape

    TM = _pick_tile_m(M, tile_m)
    if TM is None:                          # awkward M: pad rows, sliced off below
        TM = min(_round_up(M, 16), _round_up(tile_m, 16))
        M_pad = _round_up(M, TM)
        patches = jnp.pad(patches, ((0, M_pad - M), (0, 0)))
    else:
        M_pad = M
    num_steps = M_pad // TM
    n_buf = 3 if num_steps >= 3 else 2

    # Weight flattened to match the (kh, kw, C)-major patch layout.  K (=147
    # for 7x7x3) is NOT padded in HBM (padding would add ~74% to the dominant
    # read stream of a memory-bound kernel).
    w2d = jnp.transpose(weight, (0, 2, 3, 1)).reshape(D, K).T.astype(jnp.bfloat16)
    # conv bias / LN gamma / LN beta collapsed into one resident (3, D) operand.
    nrm = jnp.stack([bias, gamma, beta]).astype(jnp.float32)

    out = pl.pallas_call(
        _patch_embed_kernel,
        out_shape=jax.ShapeDtypeStruct((M_pad, D), out_dtype),
        grid=(num_steps,),
        in_specs=[
            pl.BlockSpec((TM, K), lambda i: (i, 0),
                         pipeline_mode=pl.Buffered(n_buf)),    # streamed patches
            pl.BlockSpec((K, D), lambda i: (0, 0)),            # VMEM-resident weight
            pl.BlockSpec((3, D), lambda i: (0, 0)),            # VMEM-resident norm params
        ],
        out_specs=pl.BlockSpec((TM, D), lambda i: (i, 0)),
        compiler_params=pltpu.CompilerParams(
            # "parallel" lets the runtime shard the M axis across TensorCores;
            # escalate to pltpu.CORE_PARALLEL if a v7x profile shows an idle TC.
            dimension_semantics=("parallel",)),
    )(patches, w2d, nrm)

    if M_pad != M:
        out = out[:M]
    tokens = out.reshape(B, Ho * Wo, D)     # contiguous: metadata-only reshape
    return tokens, Ho, Wo


if __name__ == "__main__":
    # Small shapes consistent with the module: batch=2, in_channels=3,
    # spatial=16, patch_size=7, stride=4, embed_dim=32.
    B, C, H, W = 2, 3, 16, 16
    patch_size, stride, embed_dim = 7, 4, 32

    key = jax.random.PRNGKey(0)
    k_x, k_w, k_b, k_g, k_beta = jax.random.split(key, 5)
    x = jax.random.normal(k_x, (B, C, H, W), jnp.float32)
    weight = 0.05 * jax.random.normal(
        k_w, (embed_dim, C, patch_size, patch_size), jnp.float32)   # Conv2d weight [O, I, kh, kw]
    bias = 0.05 * jax.random.normal(k_b, (embed_dim,), jnp.float32)  # Conv2d bias
    gamma = 1.0 + 0.1 * jax.random.normal(k_g, (embed_dim,), jnp.float32)   # LayerNorm weight
    beta = 0.1 * jax.random.normal(k_beta, (embed_dim,), jnp.float32)       # LayerNorm bias

    fwd = jax.jit(patch_embedding,
                  static_argnames=("patch_size", "stride", "tile_m", "out_dtype"))
    tokens, Ho, Wo = fwd(x, weight, bias, gamma, beta,
                         patch_size=patch_size, stride=stride,
                         out_dtype=jnp.bfloat16)    # bf16 output halves store traffic
    jax.block_until_ready(tokens)
    Ho, Wo = int(Ho), int(Wo)

    # Pure-JAX f32 reference (conv + flatten/transpose + LayerNorm), identical
    # semantics to the PyTorch forward.  Tolerance covers the intentional bf16
    # operand/output casts (accumulation stays f32).
    y = jax.lax.conv_general_dilated(
        x, weight, window_strides=(stride, stride),
        padding=[(patch_size // 2, patch_size // 2)] * 2,
        dimension_numbers=("NCHW", "OIHW", "NCHW"))
    y = y + bias[None, :, None, None]
    y = y.reshape(B, embed_dim, Ho * Wo).transpose(0, 2, 1)             # [B, N, D]
    mean = jnp.mean(y, axis=-1, keepdims=True)
    var = jnp.mean(jnp.square(y - mean), axis=-1, keepdims=True)
    ref = (y - mean) / jnp.sqrt(var + 1e-5) * gamma + beta

    assert tokens.shape == (B, Ho * Wo, embed_dim), tokens.shape
    assert (Ho, Wo) == (4, 4), (Ho, Wo)
    assert jnp.allclose(tokens.astype(jnp.float32), ref, atol=5e-2, rtol=5e-2)
    print("KERNEL_OK")
</pallas_src>

<mosaic_0001>
module attributes {stable_mosaic.version = 11 : i64} {
  func.func @_patch_embed_kernel(%arg0: i32, %arg1: memref<16x147xbf16, #tpu.memory_space<vmem>>, %arg2: memref<147x32xbf16, #tpu.memory_space<vmem>>, %arg3: memref<3x32xf32, #tpu.memory_space<vmem>>, %arg4: memref<16x32xbf16, #tpu.memory_space<vmem>>) attributes {dimension_semantics = [#tpu.dimension_semantics<parallel>], iteration_bounds = array<i64: 2>, scalar_prefetch = 0 : i64, scratch_operands = 0 : i64, tpu.core_type = #tpu.core_type<tc>, window_params = [{pipeline_mode = #tpu.pipeline_mode<double_buffered>, transform_indices = @transform_0, window_bounds = array<i64: 16, 147>}, {pipeline_mode = #tpu.pipeline_mode<synchronous>, transform_indices = @transform_1, window_bounds = array<i64: 147, 32>}, {pipeline_mode = #tpu.pipeline_mode<synchronous>, transform_indices = @transform_2, window_bounds = array<i64: 3, 32>}, {transform_indices = @transform_3, window_bounds = array<i64: 16, 32>}]} {
    %c0 = arith.constant 0 : index
    %c0_0 = arith.constant 0 : index
    %0 = vector.load %arg1[%c0, %c0_0] : memref<16x147xbf16, #tpu.memory_space<vmem>>, vector<16x147xbf16>
    %c0_1 = arith.constant 0 : index
    %c0_2 = arith.constant 0 : index
    %1 = vector.load %arg2[%c0_1, %c0_2] : memref<147x32xbf16, #tpu.memory_space<vmem>>, vector<147x32xbf16>
    %cst = arith.constant dense<0.000000e+00> : vector<16x32xf32>
    %2 = tpu.matmul %0, %1, %cst {dimension_numbers = #tpu.dot_dimension_numbers<[1], [0], [0], [1], [0, 0, 1, 1], [], []>} : vector<16x147xbf16>, vector<147x32xbf16>, vector<16x32xf32> -> vector<16x32xf32>
    %c0_3 = arith.constant 0 : index
    %c0_4 = arith.constant 0 : index
    %3 = vector.load %arg3[%c0_3, %c0_4] : memref<3x32xf32, #tpu.memory_space<vmem>>, vector<3x32xf32>
    %4 = vector.extract_strided_slice %3 {offsets = [0, 0], sizes = [1, 32], strides = [1, 1]} : vector<3x32xf32> to vector<1x32xf32>
    %5 = vector.broadcast %4 : vector<1x32xf32> to vector<16x32xf32>
    %6 = arith.addf %2, %5 : vector<16x32xf32>
    %cst_5 = arith.constant dense<0.000000e+00> : vector<16xf32>
    %7 = vector.multi_reduction <add>, %6, %cst_5 [1] : vector<16x32xf32> to vector<16xf32>
    %8 = vector.shape_cast %7 : vector<16xf32> to vector<16x1xf32>
    %cst_6 = arith.constant 3.125000e-02 : f32
    %9 = vector.broadcast %cst_6 : f32 to vector<16x1xf32>
    %10 = arith.mulf %8, %9 : vector<16x1xf32>
    %11 = vector.broadcast %10 : vector<16x1xf32> to vector<16x32xf32>
    %12 = arith.subf %6, %11 : vector<16x32xf32>
    %13 = arith.mulf %12, %12 : vector<16x32xf32>
    %cst_7 = arith.constant dense<0.000000e+00> : vector<16xf32>
    %14 = vector.multi_reduction <add>, %13, %cst_7 [1] : vector<16x32xf32> to vector<16xf32>
    %15 = vector.shape_cast %14 : vector<16xf32> to vector<16x1xf32>
    %cst_8 = arith.constant 3.125000e-02 : f32
    %16 = vector.broadcast %cst_8 : f32 to vector<16x1xf32>
    %17 = arith.mulf %15, %16 : vector<16x1xf32>
    %cst_9 = arith.constant 9.99999974E-6 : f32
    %18 = vector.broadcast %cst_9 : f32 to vector<16x1xf32>
    %19 = arith.addf %17, %18 : vector<16x1xf32>
    %20 = math.rsqrt %19 : vector<16x1xf32>
    %21 = vector.broadcast %20 : vector<16x1xf32> to vector<16x32xf32>
    %22 = arith.mulf %12, %21 : vector<16x32xf32>
    %23 = vector.extract_strided_slice %3 {offsets = [1, 0], sizes = [1, 32], strides = [1, 1]} : vector<3x32xf32> to vector<1x32xf32>
    %24 = vector.broadcast %23 : vector<1x32xf32> to vector<16x32xf32>
    %25 = arith.mulf %22, %24 : vector<16x32xf32>
    %26 = vector.extract_strided_slice %3 {offsets = [2, 0], sizes = [1, 32], strides = [1, 1]} : vector<3x32xf32> to vector<1x32xf32>
    %27 = vector.broadcast %26 : vector<1x32xf32> to vector<16x32xf32>
    %28 = arith.addf %25, %27 : vector<16x32xf32>
    %29 = arith.truncf %28 : vector<16x32xf32> to vector<16x32xbf16>
    %c0_10 = arith.constant 0 : index
    %c0_11 = arith.constant 0 : index
    %30 = vector.load %arg4[%c0_10, %c0_11] : memref<16x32xbf16, #tpu.memory_space<vmem>>, vector<16x32xbf16>
    tpu.vector_store %arg4[%c0_10, %c0_11], %29 {strides = array<i32>} : memref<16x32xbf16, #tpu.memory_space<vmem>>, vector<16x32xbf16>,
    return
  }
  func.func @transform_0(%arg0: i32) -> (i32, i32) {
    %c0_i32 = arith.constant 0 : i32
    %c0_i32_0 = arith.constant 0 : i32
    return %arg0, %c0_i32 : i32, i32
  }
  func.func @transform_1(%arg0: i32) -> (i32, i32) {
    %c0_i32 = arith.constant 0 : i32
    %c0_i32_0 = arith.constant 0 : i32
    %c0_i32_1 = arith.constant 0 : i32
    return %c0_i32, %c0_i32_0 : i32, i32
  }
  func.func @transform_2(%arg0: i32) -> (i32, i32) {
    %c0_i32 = arith.constant 0 : i32
    %c0_i32_0 = arith.constant 0 : i32
    %c0_i32_1 = arith.constant 0 : i32
    return %c0_i32, %c0_i32_0 : i32, i32
  }
  func.func @transform_3(%arg0: i32) -> (i32, i32) {
    %c0_i32 = arith.constant 0 : i32
    %c0_i32_0 = arith.constant 0 : i32
    return %arg0, %c0_i32 : i32, i32
  }
}

</mosaic_0001>

<llo_original>
// kernel: patch_embedding.1
$region0: #{patch_embedding.1}
  #allocation0 [shape = 'u32[]', space=smem, size = 0x4, offset = 0x4, fixed_abs, tag = 'smem constant byte address 0x4 - core index']
  #allocation1 [shape = 'u32[144,128]{1,0:T(1,128)}', space=vmem, size = 0x12000, scoped, tag = 'internal scratch']
  %s0 = inlined_call_operand.vmem [shape: bf16[32,147], index: 0, kind: input, shape index: {}]
  %s1 = inlined_call_operand.vmem [shape: bf16[147,32], index: 1, kind: input, shape index: {}]
  %s2 = inlined_call_operand.vmem [shape: f32[3,32], index: 2, kind: input, shape index: {}]
  %s3 = inlined_call_operand.hbm [shape: bf16[32,32], index: 3, kind: output, shape index: {}]
  %s4 = sld [smem:[#allocation0]]
  $region45: #{patch_embedding.1} parent=0
    _
  %s6 = ssub.s32 1, %s4
  %s7 = scalar_select 0, %s6, %s4
  $region1: #{patch_embedding.1} parent=0
    #allocation2 [shape = 'u8[8192]{0}', space=vmem, size = 0x2000, scoped, tag = 'output window, operand 0']
    #allocation3 [shape = 's32[2]{0}', space=sflag, size = 0x8, scoped, tag = 'scoped memory for patch_embedding.1']
    %8 = vsyncpa [#allocation3], 0
    %s9 = scalar_lea.sflag [#allocation3], 1
    %10 = vsyncpa %s9, 0
    loop: start=0, step=1, limit=4
    $region2: #{patch_embedding.1} parent=1 // loop_pre_header
      _
    $region3: #{patch_embedding.1} parent=1 // loop_header
      %s12 = sphi 0, %s16
      %p13 = scmp.ge.s32.totalorder %s12, 4
      %s22 = sphi 0, %s24
      %s25 = sphi 0, %s22
      %s26 = sphi 0, %s25
      %s42 = sphi 0, %s26
      %s46 = sphi 0, %s46
      %s48 = sphi 0, %s46
      %s49 = sphi 0, %s48
      %s63 = sphi 0, %s49
      %s67 = sphi 0, %s67
      %s69 = sphi 0, %s67
      %s70 = sphi 0, %s69
      %s84 = sphi 0, %s70
      %s90 = sphi 0, %s92
      %s93 = sphi 0, %s90
      %s94 = sphi 0, %s93
      %s110 = sphi 0, %s94
    $region4: #{patch_embedding.1} parent=1 // loop_header_branch
      %15 = sbr.rel (%p13) target = $region8
    $region5: #{patch_embedding.1} parent=1 // loop_body
      %s17 = ssub.s32 %s12, 1
      %s18 = ssub.s32 %s12, 2
      %s19 = sadd.s32 %s12, 1
      %s20 = ssub.s32 %s12, %s19
      %p21 = scmp.eq.s32.totalorder %s20, 0
      %s23 = sadd.s32 %s22, 1
      %s24 = scalar_select %p21, %s22, %s23
      %p27 = pneg %p21
      %p28 = scmp.eq.s32.totalorder %s12, 1
      %p29 = por %p27, %p28
      %p30 = scmp.ne.s32.totalorder %s22, %s25
      %p31 = scmp.eq.s32.totalorder %s12, 0
      %p32 = por %p30, %p31
      %p33 = scmp.ne.s32.totalorder %s22, %s25
      %p34 = scmp.eq.s32.totalorder %s17, 1
      %p35 = por %p33, %p34
      %p36 = scmp.ne.s32.totalorder %s25, %s26
      %p37 = scmp.eq.s32.totalorder %s17, 0
      %p38 = por %p36, %p37
      %p39 = scmp.ne.s32.totalorder %s25, %s26
      %p40 = scmp.eq.s32.totalorder %s18, 1
      %p41 = por %p39, %p40
      %p43 = scmp.ne.s32.totalorder %s26, %s42
      %p44 = scmp.eq.s32.totalorder %s18, 0
      %p45 = por %p43, %p44
      %s47 = sadd.s32 %s46, 1
      %p50 = scmp.eq.s32.totalorder %s12, 1
      %p51 = scmp.ne.s32.totalorder %s46, %s48
      %p52 = scmp.eq.s32.totalorder %s12, 0
      %p53 = por %p51, %p52
      %p54 = scmp.ne.s32.totalorder %s46, %s48
      %p55 = scmp.eq.s32.totalorder %s17, 1
      %p56 = por %p54, %p55
      %p57 = scmp.ne.s32.totalorder %s48, %s49
      %p58 = scmp.eq.s32.totalorder %s17, 0
      %p59 = por %p57, %p58
      %p60 = scmp.ne.s32.totalorder %s48, %s49
      %p61 = scmp.eq.s32.totalorder %s18, 1
      %p62 = por %p60, %p61
      %p64 = scmp.ne.s32.totalorder %s49, %s63
      %p65 = scmp.eq.s32.totalorder %s18, 0
      %p66 = por %p64, %p65
      %s68 = sadd.s32 %s67, 1
      %p71 = scmp.eq.s32.totalorder %s12, 1
      %p72 = scmp.ne.s32.totalorder %s67, %s69
      %p73 = scmp.eq.s32.totalorder %s12, 0
      %p74 = por %p72, %p73
      %p75 = scmp.ne.s32.totalorder %s67, %s69
      %p76 = scmp.eq.s32.totalorder %s17, 1
      %p77 = por %p75, %p76
      %p78 = scmp.ne.s32.totalorder %s69, %s70
      %p79 = scmp.eq.s32.totalorder %s17, 0
      %p80 = por %p78, %p79
      %p81 = scmp.ne.s32.totalorder %s69, %s70
      %p82 = scmp.eq.s32.totalorder %s18, 1
      %p83 = por %p81, %p82
      %p85 = scmp.ne.s32.totalorder %s70, %s84
      %p86 = scmp.eq.s32.totalorder %s18, 0
      %p87 = por %p85, %p86
      %s88 = ssub.s32 %s12, %s19
      %p89 = scmp.eq.s32.totalorder %s88, 0
      %s91 = sadd.s32 %s90, 1
      %s92 = scalar_select %p89, %s90, %s91
      %p95 = pneg %p89
      %p96 = scmp.eq.s32.totalorder %s12, 1
      %p97 = por %p95, %p96
      %p98 = scmp.ne.s32.totalorder %s90, %s93
      %p99 = scmp.eq.s32.totalorder %s12, 0
      %p100 = por %p98, %p99
      %p101 = scmp.ne.s32.totalorder %s90, %s93
      %p102 = scmp.eq.s32.totalorder %s17, 1
      %p103 = por %p101, %p102
      %p104 = scmp.ne.s32.totalorder %s93, %s94
      %p105 = scmp.eq.s32.totalorder %s17, 0
      %p106 = por %p104, %p105
      %p107 = scmp.ne.s32.totalorder %s93, %s94
      %p108 = scmp.eq.s32.totalorder %s18, 1
      %p109 = por %p107, %p108
      %p111 = scmp.ne.s32.totalorder %s94, %s110
      %p112 = scmp.eq.s32.totalorder %s18, 0
      %p113 = por %p111, %p112
      %p114 = scmp.le.s32.totalorder 1, %s12
      %p115 = scmp.lt.s32.totalorder %s12, 3
      %p116 = pnand %p114, %p115
      %p117 = pneg %p116
      // Predicated region
      $region9: #{patch_embedding.1} parent=5 // pred_check
        _
      $region10: #{patch_embedding.1} parent=5 // pred_check_branch
        %119 = sbr.rel (%p116) target = $region12
      $region11: #{patch_embedding.1} parent=5 // pred_region
        %s120 = ssub.s32 %s12, 1
        // Predicated region
        $region13: #{patch_embedding.1} parent=11 // pred_check
          %p121 = pneg %p59
        $region14: #{patch_embedding.1} parent=11 // pred_check_branch
          %123 = sbr.rel (%p121) target = $region16
        $region15: #{patch_embedding.1} parent=11 // pred_region
          _
        $region16: #{patch_embedding.1} parent=11 // pred_fallthru
          _
        // Predicated region
        $region17: #{patch_embedding.1} parent=11 // pred_check
          %p124 = pneg %p80
        $region18: #{patch_embedding.1} parent=11 // pred_check_branch
          %126 = sbr.rel (%p124) target = $region20
        $region19: #{patch_embedding.1} parent=11 // pred_region
          _
        $region20: #{patch_embedding.1} parent=11 // pred_fallthru
          _
      $region12: #{patch_embedding.1} parent=5 // pred_fallthru
        _
      %p127 = scmp.lt.s32.totalorder %s12, 2
      // Predicated region
      $region21: #{patch_embedding.1} parent=5 // pred_check
        %p128 = pneg %p127
      $region22: #{patch_embedding.1} parent=5 // pred_check_branch
        %130 = sbr.rel (%p128) target = $region24
      $region23: #{patch_embedding.1} parent=5 // pred_region
        // Predicated region
        $region25: #{patch_embedding.1} parent=23 // pred_check
          %p131 = pneg %p32
        $region26: #{patch_embedding.1} parent=23 // pred_check_branch
          %133 = sbr.rel (%p131) target = $region28
        $region27: #{patch_embedding.1} parent=23 // pred_region
          %s134 = smul.u32 2, %s12
          %p135 = scmp.lt.s32.totalorder %s134, 3
          %s136 = scalar_select %p135, %s134, 3
          %s137 = smul.addr %s136, 2
          %s138 = smul.addr %s137, 4
          %s139 = scalar_lea.vmem %s0, %s138
          %s140 = smul.u32 2, %s12
        $region28: #{patch_embedding.1} parent=23 // pred_fallthru
          _
      $region24: #{patch_embedding.1} parent=5 // pred_fallthru
        _
      %p141 = scmp.le.s32.totalorder 1, %s12
      %p142 = scmp.lt.s32.totalorder %s12, 3
      %p143 = pnand %p141, %p142
      %p144 = pneg %p143
      // Predicated region
      $region29: #{patch_embedding.1} parent=5 // pred_check
        _
      $region30: #{patch_embedding.1} parent=5 // pred_check_branch
        %146 = sbr.rel (%p143) target = $region32
      $region31: #{patch_embedding.1} parent=5 // pred_region
        %s147 = ssub.s32 %s12, 1
        %s148 = smul.u32 2, %s17
        %p149 = scmp.lt.s32.totalorder %s148, 3
        %s150 = scalar_select %p149, %s148, 3
        %s151 = smul.addr %s150, 2
        %s152 = smul.addr %s151, 4
        %s153 = scalar_lea.vmem %s0, %s152
        %p154 = pneg %p38
        %p155 = pneg %p35
        %p156 = pneg %p59
        %p157 = pneg %p56
        %p158 = pneg %p80
        %p159 = pneg %p77
        %p160 = pneg %p106
        %p161 = pneg %p103
        %s162 = sand.u32 %s93, 1
        %s163 = scalar_lea.sflag [#allocation3], %s162
        %s164 = sand.u32 %s93, 1
        %s165 = smul.addr %s164, 8
        %s166 = scalar_lea.vmem [#allocation2], %s165
        %s167 = smul.u32 2, %s17
        %p168 = scmp.lt.s32.totalorder %s167, 3
        %s169 = scalar_select %p168, %s167, 3
        %s170 = smul.addr %s169, 2
        %s171 = smul.addr %s170, 4
        %s172 = scalar_lea.vmem %s0, %s171
        %s173 = smul.u32 2, %s17
        %s174 = smul.u32 2, %s17
        %v176 = vld [vmem:[%s172] sm:$0xff]
        %v177 = vld [vmem:[%s172 + $0x8] sm:$0xff]
        %v178 = vld [vmem:[%s1] sm:$0xf]
        %v179 = vld [vmem:[%s1 + $0x4] sm:$0xf]
        %v180 = vld [vmem:[%s1 + $0x8] sm:$0xf]
        %v181 = vld [vmem:[%s1 + $0xc] sm:$0xf]
        %v182 = vld [vmem:[%s1 + $0x10] sm:$0xf]
        %v183 = vld [vmem:[%s1 + $0x14] sm:$0xf]
        %v184 = vld [vmem:[%s1 + $0x18] sm:$0xf]
        %v185 = vld [vmem:[%s1 + $0x1c] sm:$0xf]
        %v186 = vld [vmem:[%s1 + $0x20] sm:$0xf]
        %v187 = vld [vmem:[%s1 + $0x24] sm:$0xf]
        %v188 = vld [vmem:[%s1 + $0x28] sm:$0xf]
        %v189 = vld [vmem:[%s1 + $0x2c] sm:$0xf]
        %v190 = vld [vmem:[%s1 + $0x30] sm:$0xf]
        %v191 = vld [vmem:[%s1 + $0x34] sm:$0xf]
        %v192 = vld [vmem:[%s1 + $0x38] sm:$0xf]
        %v193 = vld [vmem:[%s1 + $0x3c] sm:$0xf]
        %v194 = vld [vmem:[%s1 + $0x40] sm:$0xf]
        %v195 = vld [vmem:[%s1 + $0x44] sm:$0xf]
        %v196 = vld [vmem:[%s1 + $0x48] sm:$0x3]
        %v197 = vld [vmem:[%s2] sm:$0x7]
        %v198 = vlaneseq
        %v199 = vshrl.u32 %v198, 7
        %v200 = vsub.s32 0, %v199
        %v201 = vrot.slane %v197, %v200
        %v204 = vunpack.c.l.b16 %v176
        %v205 = vunpack.c.h.b16 %v176
        %v206 = vunpack.c.l.b16 %v177
        %v207 = vunpack.c.h.b16 %v177
        %v208 = vpack.c.b16 %v206, %v204
        %v209 = vpack.c.b16 %v207, %v205
        %v230 = vunpack.c.l.b16 %v178
        %v231 = vunpack.c.l.b16 %v179
        %v232 = vunpack.c.l.b16 %v180
        %v233 = vunpack.c.l.b16 %v181
        %v234 = vunpack.c.l.b16 %v182
        %v235 = vunpack.c.l.b16 %v183
        %v236 = vunpack.c.l.b16 %v184
        %v237 = vunpack.c.l.b16 %v185
        %v238 = vunpack.c.l.b16 %v186
        %v239 = vunpack.c.l.b16 %v187
        %v240 = vunpack.c.l.b16 %v188
        %v241 = vunpack.c.l.b16 %v189
        %v242 = vunpack.c.l.b16 %v190
        %v243 = vunpack.c.l.b16 %v191
        %v244 = vunpack.c.l.b16 %v192
        %v245 = vunpack.c.l.b16 %v193
        %v246 = vunpack.c.l.b16 %v194
        %v247 = vunpack.c.l.b16 %v195
        %v248 = vunpack.c.l.b16 %v196
        %v249 = vpack.c.b16 %v231, %v230
        %v250 = vpack.c.b16 %v233, %v232
        %v251 = vpack.c.b16 %v235, %v234
        %v252 = vpack.c.b16 %v237, %v236
        %v253 = vpack.c.b16 %v239, %v238
        %v254 = vpack.c.b16 %v241, %v240
        %v255 = vpack.c.b16 %v243, %v242
        %v256 = vpack.c.b16 %v245, %v244
        %v257 = vpack.c.b16 %v247, %v246
        %v258 = vpack.c.b16 %v248, %v248
        %vm268 = vcmask 154624
        %v270 = vsel %vm268, %v209, 0
        %vm272 = vcmask 1040384
        %vm273 = vcmask 1041408
        %v274 = vsel %vm272, 4294967295, 65535
        %v275 = vsel %vm273, %v274, 0
        %v277 = vand.u32 %v258, %v275
        %279 = vmatprep.subr.bf16.mxu0 0
        %280 = vmatpush1.bf16.msra.mxu0 %v249
        %281 = vmatprep.subr.bf16.mxu0 0
        %282 = vmatpush1.bf16.msra.mxu0 %v250
        %283 = vmatprep.subr.bf16.mxu0 0
        %284 = vmatpush1.bf16.msra.mxu0 %v251
        %285 = vmatprep.subr.bf16.mxu0 0
        %286 = vmatpush1.bf16.msra.mxu0 %v252
        %287 = vmatprep.subr.bf16.mxu0 0
        %288 = vmatpush1.bf16.msra.mxu0 %v253
        %289 = vmatprep.subr.bf16.mxu0 0
        %290 = vmatpush1.bf16.msra.mxu0 %v254
        %291 = vmatprep.subr.bf16.mxu0 0
        %292 = vmatpush1.bf16.msra.mxu0 %v255
        %293 = vmatprep.subr.bf16.mxu0 0
        %294 = vmatpush1.bf16.msra.mxu0 %v256
        %295 = vmatprep.subr.bf16.mxu0 0
        %296 = vmatpush1.bf16.msra.mxu0 %v257
        %297 = vmatprep.subr.bf16.mxu0 0
        %298 = vmatpush1.bf16.msra.mxu0 %v277
        %299 = vmatprep.subr.bf16.mxu0 0
        %300 = vmatpush1.bf16.msra.mxu0 0
        %301 = vmatprep.subr.bf16.mxu0 0
        %302 = vmatpush1.bf16.msra.mxu0 0
        %303 = vmatprep.subr.bf16.mxu0 0
        %304 = vmatpush1.bf16.msra.mxu0 0
        %305 = vmatprep.subr.bf16.mxu0 0
        %306 = vmatpush1.bf16.msra.mxu0 0
        %307 = vmatprep.subr.bf16.mxu0 0
        %308 = vmatpush1.bf16.msra.mxu0 0
        %309 = vmatprep.subr.bf16.mxu0 0
        %310 = vmatpush1.bf16.msra.mxu0 0
        %311 = vmatprep.mubr.bf16.mxu0 %v270
        %312 = vmatmul.mubr.bf16.gmra.mrb[0].mxu0 %v208
        %v313 = vpop.f32.mrb[0].mxu0
        %v314 = vadd.f32 %v201, %v313
        %v315 = vpop.f32.mrb[0].mxu0
        %v316 = vpop.f32.mrb[0].mxu0
        %v317 = vadd.f32 %v201, %v316
        %v318 = vpop.f32.mrb[0].mxu0
        %319 = vdwg.mxu0
        %vm320 = vcmask 261120
        %v321 = vsel %vm320, %v314, 0.0
        %322 = vadd.xlane.f32.xlu0 %v321
        %v323 = vpop.xlane.xlu0 %322
        %v324 = vsel %vm320, %v317, 0.0
        %325 = vadd.xlane.f32.xlu0 %v324
        %v326 = vpop.xlane.xlu0 %325
        %v327 = vmul.f32 %v323, 0.03125
        %v328 = vmul.f32 %v326, 0.03125
        %v329 = vsub.f32 %v314, %v327
        %v330 = vsub.f32 %v317, %v328
        %v331 = vmul.f32 %v329, %v329
        %v332 = vmul.f32 %v330, %v330
        %v333 = vsel %vm320, %v331, 0.0
        %334 = vadd.xlane.f32.xlu0 %v333
        %v335 = vpop.xlane.xlu0 %334
        %v336 = vsel %vm320, %v332, 0.0
        %337 = vadd.xlane.f32.xlu0 %v336
        %v338 = vpop.xlane.xlu0 %337
        %v339 = vmul.f32 %v335, 0.03125
        %v340 = vmul.f32 %v338, 0.03125
        %v341 = vadd.f32 %v339, 1e-05
        %v342 = vadd.f32 %v340, 1e-05
        %v343 = vrsqrt.pop %v341
        %v344 = vrsqrt.pop %v342
        %v345 = vmul.f32 %v329, %v343
        %v346 = vmul.f32 %v330, %v344
        %v347 = vlaneseq
        %v348 = vshrl.u32 %v347, 7
        %v349 = vsub.s32 1, %v348
        %v350 = vrot.slane %v197, %v349
        %v351 = vmul.f32 %v345, %v350
        %v352 = vmul.f32 %v346, %v350
        %v353 = vlaneseq
        %v354 = vshrl.u32 %v353, 7
        %v355 = vsub.s32 2, %v354
        %v356 = vrot.slane %v197, %v355
        %v357 = vadd.f32 %v351, %v356
        %v358 = vadd.f32 %v352, %v356
        %v359 = vpack.c.bf16 %v358, %v357
        %v361 = vunpack.c.l.b16 %v359
        %v362 = vunpack.c.h.b16 %v359
        %v363 = vpack.c.b16 %v361, %v361
        %v364 = vpack.c.b16 %v362, %v362
        %vm367 = vcmask 257024
        %368 = vst.msk [vmem:[%s166] sm:$0xf] %vm367, %v363
        %369 = vst.msk [vmem:[%s166 + $0x4] sm:$0xf] %vm367, %v364
        %s370 = sand.u32 %s93, 1
        %s371 = scalar_lea.sflag [#allocation3], %s370
        %s372 = sand.u32 %s93, 1
        %s373 = smul.addr %s372, 8
        %s374 = scalar_lea.vmem [#allocation2], %s373
        // Predicated region
        $region33: #{patch_embedding.1} parent=31 // pred_check
          %p375 = pneg %p103
        $region34: #{patch_embedding.1} parent=31 // pred_check_branch
          %377 = sbr.rel (%p375) target = $region36
        $region35: #{patch_embedding.1} parent=31 // pred_region
          %s378 = smul.u32 2, %s17
          %s380 = ssub.s32 128, 128
          %381 = vsyncadd %s371, %s380
          %s382 = smul.addr %s378, 64
          %s383 = scalar_lea.hbm %s3, %s382
          %s384 = sshll.u32 %s374, 4
          %s385 = int_to_ptr.vmem [resolvable:$true] %s384
          %390 = dma.vmem_to_hbm [thread:$0]  %s385, 128, %s383, %s371, 64, 64, 4
        $region36: #{patch_embedding.1} parent=31 // pred_fallthru
          _
      $region32: #{patch_embedding.1} parent=5 // pred_fallthru
        _
      %p391 = scmp.le.s32.totalorder 2, %s12
      // Predicated region
      $region37: #{patch_embedding.1} parent=5 // pred_check
        %p392 = pneg %p391
      $region38: #{patch_embedding.1} parent=5 // pred_check_branch
        %394 = sbr.rel (%p392) target = $region40
      $region39: #{patch_embedding.1} parent=5 // pred_region
        %s395 = ssub.s32 %s12, 2
        // Predicated region
        $region41: #{patch_embedding.1} parent=39 // pred_check
          %p396 = pneg %p109
        $region42: #{patch_embedding.1} parent=39 // pred_check_branch
          %398 = sbr.rel (%p396) target = $region44
        $region43: #{patch_embedding.1} parent=39 // pred_region
          %s399 = sand.u32 %s94, 1
          %s400 = scalar_lea.sflag [#allocation3], %s399
          %s401 = sand.u32 %s94, 1
          %s402 = smul.addr %s401, 8
          %s403 = scalar_lea.vmem [#allocation2], %s402
          %404 = dma.done %s400, 128
        $region44: #{patch_embedding.1} parent=39 // pred_fallthru
          _
      $region40: #{patch_embedding.1} parent=5 // pred_fallthru
        _
    $region6: #{patch_embedding.1} parent=1 // loop_footer
      %s16 = sadd.s32 1, %s12
    $region7: #{patch_embedding.1} parent=1 // loop_footer_branch
      %11 = sbr.rel target = $region3
    $region8: #{patch_embedding.1} parent=1 // loop_exit
      _
    %405 = vsyncpa [#allocation3], 1
    %s406 = scalar_lea.sflag [#allocation3], 1
    %407 = vsyncpa %s406, 1

</llo_original>
